<compile_context>
chip_gen: v6e
topology: v6e:2x2x1
jax: 0.10.0
libtpu: 0.0.40
codegen_flags: <defaults>
</compile_context>

<pallas_src>
import jax
import jax.numpy as jnp
from jax.experimental import pallas as pl
from jax.experimental.pallas import tpu as pltpu

BN_EPS = 1e-5
LANE = 128


def _round_up(n, m):
    return ((n + m - 1) // m) * m


def _pad_to(a, shape):
    pads = [(0, s - d) for d, s in zip(a.shape, shape)]
    return jnp.pad(a, pads)


def decoder_forward(x, params, matmul_dtype=jnp.bfloat16):
    """x: (B, center_size) f32. params: dict with pre-transposed (in, out) weights."""
    B, center = x.shape
    h2 = params["w1"].shape[1]
    h1 = params["w2"].shape[1]
    out = params["w3"].shape[1]

    cp = _round_up(center, LANE)
    h2p = _round_up(h2, LANE)
    h1p = _round_up(h1, LANE)
    outp = _round_up(out, LANE)

    # ---- lane-dense, (optionally) bf16 matmul operands ----
    xp = _pad_to(x, (B, cp)).astype(matmul_dtype)
    w1 = _pad_to(params["w1"], (cp, h2p)).astype(matmul_dtype)
    w2 = _pad_to(params["w2"], (h2p, h1p)).astype(matmul_dtype)
    w3 = _pad_to(params["w3"], (h1p, outp)).astype(matmul_dtype)

    # ---- pack the 7 per-feature vectors into one (3, W) f32 slab ----
    # row 0: biases, row 1: gammas (0 in padding), row 2: betas.
    def seg(b, g, be, width):
        return jnp.stack([
            _pad_to(b.reshape(-1).astype(jnp.float32), (width,)),
            _pad_to(g.reshape(-1).astype(jnp.float32), (width,)),
            _pad_to(be.reshape(-1).astype(jnp.float32), (width,)),
        ])

    zeros_out = jnp.zeros((out,), jnp.float32)
    vecs = jnp.concatenate([
        seg(params["b1"], params["g1"], params["be1"], h2p),
        seg(params["b2"], params["g2"], params["be2"], h1p),
        seg(params["b3"], zeros_out, zeros_out, outp),
    ], axis=1)

    def kernel(x_ref, w1_ref, w2_ref, w3_ref, vec_ref, o_ref):
        def bn_tanh(h, off, width):
            v = vec_ref[:, off:off + width]          # (3, width) f32
            b, g, be = v[0:1], v[1:2], v[2:3]
            h = h + b                                # linear bias
            mu = jnp.mean(h, axis=0, keepdims=True)
            var = jnp.maximum(
                jnp.mean(h * h, axis=0, keepdims=True) - mu * mu, 0.0)
            scale = g * jax.lax.rsqrt(var + BN_EPS)  # EUP rsqrt
            shift = be - mu * scale
            return jnp.tanh(h * scale + shift)       # single FMA pass + EUP tanh

        # layer 1: Linear + BN + Tanh
        h = jnp.dot(x_ref[...], w1_ref[...], preferred_element_type=jnp.float32)
        h = bn_tanh(h, 0, h2p)
        # layer 2: Linear + BN + Tanh
        h = jnp.dot(h.astype(matmul_dtype), w2_ref[...],
                    preferred_element_type=jnp.float32)
        h = bn_tanh(h, h2p, h1p)
        # layer 3: Linear
        h = jnp.dot(h.astype(matmul_dtype), w3_ref[...],
                    preferred_element_type=jnp.float32)
        b3 = vec_ref[0:1, h2p + h1p:h2p + h1p + outp]
        o_ref[...] = (h + b3).astype(o_ref.dtype)

    # explicit VMEM budget (fits v7x's 64 MiB per-TC VMEM)
    mm_isz = jnp.dtype(matmul_dtype).itemsize
    need = 2 * (B * cp * mm_isz + cp * h2p * mm_isz + h2p * h1p * mm_isz
                + h1p * outp * mm_isz + vecs.size * 4 + B * outp * 4) \
        + 4 * B * max(h2p, h1p, outp) * 4
    vmem_limit = min(max(int(need), 32 * 1024 * 1024), 64 * 1024 * 1024)

    vmem = pl.BlockSpec(memory_space=pltpu.MemorySpace.VMEM)
    y = pl.pallas_call(
        kernel,
        out_shape=jax.ShapeDtypeStruct((B, outp), jnp.float32),
        in_specs=[vmem] * 5,
        out_specs=vmem,
        compiler_params=pltpu.CompilerParams(vmem_limit_bytes=vmem_limit),
    )(xp, w1, w2, w3, vecs)
    return y[:, :out]


def init_params(key, output_size, hidden_size1, hidden_size2, center_size):
    """Deterministic init mimicking PyTorch Linear defaults; BN gamma=1, beta=0."""
    ks = jax.random.split(key, 6)

    def linear(kw, kb, fan_in, fan_out):
        bound = 1.0 / jnp.sqrt(fan_in)
        # store weight transposed: (in, out) so the kernel does x @ W directly
        w = jax.random.uniform(kw, (fan_in, fan_out), jnp.float32, -bound, bound)
        b = jax.random.uniform(kb, (1, fan_out), jnp.float32, -bound, bound)
        return w, b

    w1, b1 = linear(ks[0], ks[1], center_size, hidden_size2)
    w2, b2 = linear(ks[2], ks[3], hidden_size2, hidden_size1)
    w3, b3 = linear(ks[4], ks[5], hidden_size1, output_size)
    return {
        "w1": w1, "b1": b1,
        "g1": jnp.ones((1, hidden_size2), jnp.float32),
        "be1": jnp.zeros((1, hidden_size2), jnp.float32),
        "w2": w2, "b2": b2,
        "g2": jnp.ones((1, hidden_size1), jnp.float32),
        "be2": jnp.zeros((1, hidden_size1), jnp.float32),
        "w3": w3, "b3": b3,
    }


def decoder_reference(x, p, matmul_dtype=jnp.float32):
    """Pure-JAX reference (training-mode BatchNorm, biased batch variance)."""
    def mm(a, b):
        return jnp.dot(a.astype(matmul_dtype), b.astype(matmul_dtype),
                       preferred_element_type=jnp.float32)

    def bn_tanh(h, g, be):
        mu = h.mean(0, keepdims=True)
        var = ((h - mu) ** 2).mean(0, keepdims=True)
        return jnp.tanh(g * (h - mu) / jnp.sqrt(var + BN_EPS) + be)

    h = bn_tanh(mm(x, p["w1"]) + p["b1"], p["g1"], p["be1"])
    h = bn_tanh(mm(h, p["w2"]) + p["b2"], p["g2"], p["be2"])
    return mm(h, p["w3"]) + p["b3"]


if __name__ == "__main__":
    # Small shapes: batch=8, center=32, hidden2=64, hidden1=128, output=32
    B, CENTER, H2, H1, OUT = 8, 32, 64, 128, 32

    key = jax.random.PRNGKey(0)
    kx, kp = jax.random.split(key)
    x = jax.random.normal(kx, (B, CENTER), jnp.float32)
    params = init_params(kp, OUT, H1, H2, CENTER)

    # 1) exact-semantics check (f32 matmul operands)
    y32 = jax.block_until_ready(decoder_forward(x, params, matmul_dtype=jnp.float32))
    ref32 = decoder_reference(x, params, jnp.float32)
    assert y32.shape == (B, OUT)
    assert jnp.allclose(y32, ref32, atol=1e-4, rtol=1e-4)

    # 2) fast path: bf16 MXU operands, f32 accumulation / BN / tanh
    ybf = jax.block_until_ready(decoder_forward(x, params, matmul_dtype=jnp.bfloat16))
    refbf = decoder_reference(x, params, jnp.bfloat16)
    assert ybf.shape == (B, OUT)
    assert jnp.allclose(ybf, refbf, atol=1e-2, rtol=1e-2)

    print("KERNEL_OK")
</pallas_src>

<mosaic_0001>
module attributes {stable_mosaic.version = 11 : i64} {
  func.func @kernel(%arg0: memref<8x128xf32, #tpu.memory_space<vmem>>, %arg1: memref<128x128xf32, #tpu.memory_space<vmem>>, %arg2: memref<128x128xf32, #tpu.memory_space<vmem>>, %arg3: memref<128x128xf32, #tpu.memory_space<vmem>>, %arg4: memref<3x384xf32, #tpu.memory_space<vmem>>, %arg5: memref<8x128xf32, #tpu.memory_space<vmem>>) attributes {dimension_semantics = [], scalar_prefetch = 0 : i64, scratch_operands = 0 : i64, tpu.core_type = #tpu.core_type<tc>} {
    %c0 = arith.constant 0 : index
    %c0_0 = arith.constant 0 : index
    %0 = vector.load %arg0[%c0, %c0_0] : memref<8x128xf32, #tpu.memory_space<vmem>>, vector<8x128xf32>
    %c0_1 = arith.constant 0 : index
    %c0_2 = arith.constant 0 : index
    %1 = vector.load %arg1[%c0_1, %c0_2] : memref<128x128xf32, #tpu.memory_space<vmem>>, vector<128x128xf32>
    %cst = arith.constant dense<0.000000e+00> : vector<8x128xf32>
    %2 = tpu.matmul %0, %1, %cst {dimension_numbers = #tpu.dot_dimension_numbers<[1], [0], [0], [1], [0, 0, 1, 1], [], []>} : vector<8x128xf32>, vector<128x128xf32>, vector<8x128xf32> -> vector<8x128xf32>
    %c0_3 = arith.constant 0 : index
    %c0_4 = arith.constant 0 : index
    %3 = vector.load %arg4[%c0_3, %c0_4] : memref<3x384xf32, #tpu.memory_space<vmem>>, vector<3x128xf32>
    %4 = vector.extract_strided_slice %3 {offsets = [0, 0], sizes = [1, 128], strides = [1, 1]} : vector<3x128xf32> to vector<1x128xf32>
    %5 = vector.extract_strided_slice %3 {offsets = [1, 0], sizes = [1, 128], strides = [1, 1]} : vector<3x128xf32> to vector<1x128xf32>
    %6 = vector.extract_strided_slice %3 {offsets = [2, 0], sizes = [1, 128], strides = [1, 1]} : vector<3x128xf32> to vector<1x128xf32>
    %7 = vector.broadcast %4 : vector<1x128xf32> to vector<8x128xf32>
    %8 = arith.addf %2, %7 : vector<8x128xf32>
    %cst_5 = arith.constant dense<0.000000e+00> : vector<128xf32>
    %9 = vector.multi_reduction <add>, %8, %cst_5 [0] : vector<8x128xf32> to vector<128xf32>
    %10 = vector.shape_cast %9 : vector<128xf32> to vector<1x128xf32>
    %cst_6 = arith.constant 8.000000e+00 : f32
    %11 = vector.broadcast %cst_6 : f32 to vector<1x128xf32>
    %12 = arith.divf %10, %11 : vector<1x128xf32>
    %13 = arith.mulf %8, %8 : vector<8x128xf32>
    %cst_7 = arith.constant dense<0.000000e+00> : vector<128xf32>
    %14 = vector.multi_reduction <add>, %13, %cst_7 [0] : vector<8x128xf32> to vector<128xf32>
    %15 = vector.shape_cast %14 : vector<128xf32> to vector<1x128xf32>
    %cst_8 = arith.constant 8.000000e+00 : f32
    %16 = vector.broadcast %cst_8 : f32 to vector<1x128xf32>
    %17 = arith.divf %15, %16 : vector<1x128xf32>
    %18 = arith.mulf %12, %12 : vector<1x128xf32>
    %19 = arith.subf %17, %18 : vector<1x128xf32>
    %cst_9 = arith.constant 0.000000e+00 : f32
    %20 = vector.broadcast %cst_9 : f32 to vector<1x128xf32>
    %21 = arith.maximumf %19, %20 : vector<1x128xf32>
    %cst_10 = arith.constant 9.99999974E-6 : f32
    %22 = vector.broadcast %cst_10 : f32 to vector<1x128xf32>
    %23 = arith.addf %21, %22 : vector<1x128xf32>
    %24 = math.rsqrt %23 : vector<1x128xf32>
    %25 = arith.mulf %5, %24 : vector<1x128xf32>
    %26 = arith.mulf %12, %25 : vector<1x128xf32>
    %27 = arith.subf %6, %26 : vector<1x128xf32>
    %28 = vector.broadcast %25 : vector<1x128xf32> to vector<8x128xf32>
    %29 = arith.mulf %8, %28 : vector<8x128xf32>
    %30 = vector.broadcast %27 : vector<1x128xf32> to vector<8x128xf32>
    %31 = arith.addf %29, %30 : vector<8x128xf32>
    %32 = math.tanh %31 : vector<8x128xf32>
    %c0_11 = arith.constant 0 : index
    %c0_12 = arith.constant 0 : index
    %33 = vector.load %arg2[%c0_11, %c0_12] : memref<128x128xf32, #tpu.memory_space<vmem>>, vector<128x128xf32>
    %cst_13 = arith.constant dense<0.000000e+00> : vector<8x128xf32>
    %34 = tpu.matmul %32, %33, %cst_13 {dimension_numbers = #tpu.dot_dimension_numbers<[1], [0], [0], [1], [0, 0, 1, 1], [], []>} : vector<8x128xf32>, vector<128x128xf32>, vector<8x128xf32> -> vector<8x128xf32>
    %c0_14 = arith.constant 0 : index
    %c128 = arith.constant 128 : index
    %35 = vector.load %arg4[%c0_14, %c128] : memref<3x384xf32, #tpu.memory_space<vmem>>, vector<3x128xf32>
    %36 = vector.extract_strided_slice %35 {offsets = [0, 0], sizes = [1, 128], strides = [1, 1]} : vector<3x128xf32> to vector<1x128xf32>
    %37 = vector.extract_strided_slice %35 {offsets = [1, 0], sizes = [1, 128], strides = [1, 1]} : vector<3x128xf32> to vector<1x128xf32>
    %38 = vector.extract_strided_slice %35 {offsets = [2, 0], sizes = [1, 128], strides = [1, 1]} : vector<3x128xf32> to vector<1x128xf32>
    %39 = vector.broadcast %36 : vector<1x128xf32> to vector<8x128xf32>
    %40 = arith.addf %34, %39 : vector<8x128xf32>
    %cst_15 = arith.constant dense<0.000000e+00> : vector<128xf32>
    %41 = vector.multi_reduction <add>, %40, %cst_15 [0] : vector<8x128xf32> to vector<128xf32>
    %42 = vector.shape_cast %41 : vector<128xf32> to vector<1x128xf32>
    %cst_16 = arith.constant 8.000000e+00 : f32
    %43 = vector.broadcast %cst_16 : f32 to vector<1x128xf32>
    %44 = arith.divf %42, %43 : vector<1x128xf32>
    %45 = arith.mulf %40, %40 : vector<8x128xf32>
    %cst_17 = arith.constant dense<0.000000e+00> : vector<128xf32>
    %46 = vector.multi_reduction <add>, %45, %cst_17 [0] : vector<8x128xf32> to vector<128xf32>
    %47 = vector.shape_cast %46 : vector<128xf32> to vector<1x128xf32>
    %cst_18 = arith.constant 8.000000e+00 : f32
    %48 = vector.broadcast %cst_18 : f32 to vector<1x128xf32>
    %49 = arith.divf %47, %48 : vector<1x128xf32>
    %50 = arith.mulf %44, %44 : vector<1x128xf32>
    %51 = arith.subf %49, %50 : vector<1x128xf32>
    %cst_19 = arith.constant 0.000000e+00 : f32
    %52 = vector.broadcast %cst_19 : f32 to vector<1x128xf32>
    %53 = arith.maximumf %51, %52 : vector<1x128xf32>
    %cst_20 = arith.constant 9.99999974E-6 : f32
    %54 = vector.broadcast %cst_20 : f32 to vector<1x128xf32>
    %55 = arith.addf %53, %54 : vector<1x128xf32>
    %56 = math.rsqrt %55 : vector<1x128xf32>
    %57 = arith.mulf %37, %56 : vector<1x128xf32>
    %58 = arith.mulf %44, %57 : vector<1x128xf32>
    %59 = arith.subf %38, %58 : vector<1x128xf32>
    %60 = vector.broadcast %57 : vector<1x128xf32> to vector<8x128xf32>
    %61 = arith.mulf %40, %60 : vector<8x128xf32>
    %62 = vector.broadcast %59 : vector<1x128xf32> to vector<8x128xf32>
    %63 = arith.addf %61, %62 : vector<8x128xf32>
    %64 = math.tanh %63 : vector<8x128xf32>
    %c0_21 = arith.constant 0 : index
    %c0_22 = arith.constant 0 : index
    %65 = vector.load %arg3[%c0_21, %c0_22] : memref<128x128xf32, #tpu.memory_space<vmem>>, vector<128x128xf32>
    %cst_23 = arith.constant dense<0.000000e+00> : vector<8x128xf32>
    %66 = tpu.matmul %64, %65, %cst_23 {dimension_numbers = #tpu.dot_dimension_numbers<[1], [0], [0], [1], [0, 0, 1, 1], [], []>} : vector<8x128xf32>, vector<128x128xf32>, vector<8x128xf32> -> vector<8x128xf32>
    %c0_24 = arith.constant 0 : index
    %c256 = arith.constant 256 : index
    %67 = vector.load %arg4[%c0_24, %c256] : memref<3x384xf32, #tpu.memory_space<vmem>>, vector<1x128xf32>
    %68 = vector.broadcast %67 : vector<1x128xf32> to vector<8x128xf32>
    %69 = arith.addf %66, %68 : vector<8x128xf32>
    %c0_25 = arith.constant 0 : index
    %c0_26 = arith.constant 0 : index
    %70 = vector.load %arg5[%c0_25, %c0_26] : memref<8x128xf32, #tpu.memory_space<vmem>>, vector<8x128xf32>
    tpu.vector_store %arg5[%c0_25, %c0_26], %69 {strides = array<i32>} : memref<8x128xf32, #tpu.memory_space<vmem>>, vector<8x128xf32>,
    return
  }
}

</mosaic_0001>

<llo_original>
// kernel: tpu_custom_call.1
$region0: #{tpu_custom_call.1}
  #allocation0 [shape = 'u32[]', space=smem, size = 0x4, offset = 0x4, fixed_abs, tag = 'smem constant byte address 0x4 - core index']
  #allocation1 [shape = 'u32[144,128]{1,0:T(1,128)}', space=vmem, size = 0x12000, scoped, tag = 'internal scratch']
  %s0 = inlined_call_operand.hbm [shape: f32[8,128], index: 0, kind: input, shape index: {}]
  %s1 = inlined_call_operand.hbm [shape: f32[128,128], index: 1, kind: input, shape index: {}]
  %s2 = inlined_call_operand.hbm [shape: f32[128,128], index: 2, kind: input, shape index: {}]
  %s3 = inlined_call_operand.hbm [shape: f32[128,128], index: 3, kind: input, shape index: {}]
  %s4 = inlined_call_operand.hbm [shape: f32[3,384], index: 4, kind: input, shape index: {}]
  %s5 = inlined_call_operand.hbm [shape: f32[8,128], index: 5, kind: output, shape index: {}]
  %s6 = sld [smem:[#allocation0]]
  $region50: #{tpu_custom_call.1} parent=0
    _
  %s8 = ssub.s32 1, %s6
  %s9 = scalar_select 0, %s8, %s6
  $region1: #{tpu_custom_call.1} parent=0
    #allocation2 [shape = 'u8[4096]{0}', space=vmem, size = 0x1000, scoped, tag = 'input window, operand 0, single buffered']
    #allocation3 [shape = 's32[1]{0}', space=sflag, size = 0x4, scoped, tag = 'scoped memory for tpu_custom_call.1']
    #allocation4 [shape = 's32[1]{0}', space=sflag, size = 0x4, scoped, tag = 'scoped memory for tpu_custom_call.1']
    #allocation5 [shape = 'u8[65536]{0}', space=vmem, size = 0x10000, scoped, tag = 'input window, operand 1, single buffered']
    #allocation6 [shape = 's32[1]{0}', space=sflag, size = 0x4, scoped, tag = 'scoped memory for tpu_custom_call.1']
    #allocation7 [shape = 'u8[65536]{0}', space=vmem, size = 0x10000, scoped, tag = 'input window, operand 2, single buffered']
    #allocation8 [shape = 'u8[65536]{0}', space=vmem, size = 0x10000, scoped, tag = 'input window, operand 3, single buffered']
    #allocation9 [shape = 's32[1]{0}', space=sflag, size = 0x4, scoped, tag = 'scoped memory for tpu_custom_call.1']
    #allocation10 [shape = 'u8[6144]{0}', space=vmem, size = 0x1800, scoped, tag = 'input window, operand 4, single buffered']
    #allocation11 [shape = 'u8[4096]{0}', space=vmem, size = 0x1000, scoped, tag = 'output window, operand 0, single buffered']
    %10 = vsyncpa [#allocation3], 0
    %11 = vsyncpa [#allocation6], 0
    %12 = vsyncpa [#allocation9], 0
    %13 = vsyncpa [#allocation4], 0
    // Predicated region
    $region2: #{tpu_custom_call.1} parent=1 // pred_check
      _
    $region3: #{tpu_custom_call.1} parent=1 // pred_check_branch
      %15 = sbr.rel (0) target = $region5
    $region4: #{tpu_custom_call.1} parent=1 // pred_region
      %s17 = ssub.s32 128, 128
      %18 = vsyncadd [#allocation3], %s17
      %s20 = sshll.u32 [#allocation2], 4
      %s21 = int_to_ptr.vmem [resolvable:$true] %s20
      %23 = dma.hbm_to_vmem [thread:$0]  %s0, 128, %s21, [#allocation3]
    $region5: #{tpu_custom_call.1} parent=1 // pred_fallthru
      _
    // Predicated region
    $region6: #{tpu_custom_call.1} parent=1 // pred_check
      _
    $region7: #{tpu_custom_call.1} parent=1 // pred_check_branch
      %25 = sbr.rel (0) target = $region9
    $region8: #{tpu_custom_call.1} parent=1 // pred_region
      %s27 = ssub.s32 2048, 2048
      %28 = vsyncadd [#allocation6], %s27
      %s29 = sshll.u32 [#allocation5], 4
      %s30 = int_to_ptr.vmem [resolvable:$true] %s29
      %35 = dma.hbm_to_vmem [thread:$0]  %s1, 2048, %s30, [#allocation6], 128, 128, 8
    $region9: #{tpu_custom_call.1} parent=1 // pred_fallthru
      _
    // Predicated region
    $region10: #{tpu_custom_call.1} parent=1 // pred_check
      _
    $region11: #{tpu_custom_call.1} parent=1 // pred_check_branch
      %37 = sbr.rel (0) target = $region13
    $region12: #{tpu_custom_call.1} parent=1 // pred_region
      %s39 = ssub.s32 2048, 2048
      %40 = vsyncadd [#allocation6], %s39
      %s41 = sshll.u32 [#allocation7], 4
      %s42 = int_to_ptr.vmem [resolvable:$true] %s41
      %47 = dma.hbm_to_vmem [thread:$0]  %s2, 2048, %s42, [#allocation6], 128, 128, 8
    $region13: #{tpu_custom_call.1} parent=1 // pred_fallthru
      _
    // Predicated region
    $region14: #{tpu_custom_call.1} parent=1 // pred_check
      _
    $region15: #{tpu_custom_call.1} parent=1 // pred_check_branch
      %49 = sbr.rel (0) target = $region17
    $region16: #{tpu_custom_call.1} parent=1 // pred_region
      %s51 = ssub.s32 2048, 2048
      %52 = vsyncadd [#allocation9], %s51
      %s53 = sshll.u32 [#allocation8], 4
      %s54 = int_to_ptr.vmem [resolvable:$true] %s53
      %59 = dma.hbm_to_vmem [thread:$0]  %s3, 2048, %s54, [#allocation9], 128, 128, 8
    $region17: #{tpu_custom_call.1} parent=1 // pred_fallthru
      _
    // Predicated region
    $region18: #{tpu_custom_call.1} parent=1 // pred_check
      _
    $region19: #{tpu_custom_call.1} parent=1 // pred_check_branch
      %61 = sbr.rel (0) target = $region21
    $region20: #{tpu_custom_call.1} parent=1 // pred_region
      %s63 = ssub.s32 192, 192
      %64 = vsyncadd [#allocation9], %s63
      %s66 = sshll.u32 [#allocation10], 4
      %s67 = int_to_ptr.vmem [resolvable:$true] %s66
      %69 = dma.hbm_to_vmem [thread:$0]  %s4, 192, %s67, [#allocation9]
    $region21: #{tpu_custom_call.1} parent=1 // pred_fallthru
      _
    // Predicated region
    $region22: #{tpu_custom_call.1} parent=1 // pred_check
      _
    $region23: #{tpu_custom_call.1} parent=1 // pred_check_branch
      %71 = sbr.rel (0) target = $region25
    $region24: #{tpu_custom_call.1} parent=1 // pred_region
      %72 = dma.done [#allocation3], 128
    $region25: #{tpu_custom_call.1} parent=1 // pred_fallthru
      _
    // Predicated region
    $region26: #{tpu_custom_call.1} parent=1 // pred_check
      _
    $region27: #{tpu_custom_call.1} parent=1 // pred_check_branch
      %74 = sbr.rel (0) target = $region29
    $region28: #{tpu_custom_call.1} parent=1 // pred_region
      %75 = dma.done [#allocation6], 2048
    $region29: #{tpu_custom_call.1} parent=1 // pred_fallthru
      _
    // Predicated region
    $region30: #{tpu_custom_call.1} parent=1 // pred_check
      _
    $region31: #{tpu_custom_call.1} parent=1 // pred_check_branch
      %77 = sbr.rel (0) target = $region33
    $region32: #{tpu_custom_call.1} parent=1 // pred_region
      %78 = dma.done [#allocation6], 2048
    $region33: #{tpu_custom_call.1} parent=1 // pred_fallthru
      _
    // Predicated region
    $region34: #{tpu_custom_call.1} parent=1 // pred_check
      _
    $region35: #{tpu_custom_call.1} parent=1 // pred_check_branch
      %80 = sbr.rel (0) target = $region37
    $region36: #{tpu_custom_call.1} parent=1 // pred_region
      %81 = dma.done [#allocation9], 2048
    $region37: #{tpu_custom_call.1} parent=1 // pred_fallthru
      _
    // Predicated region
    $region38: #{tpu_custom_call.1} parent=1 // pred_check
      _
    $region39: #{tpu_custom_call.1} parent=1 // pred_check_branch
      %83 = sbr.rel (0) target = $region41
    $region40: #{tpu_custom_call.1} parent=1 // pred_region
      %84 = dma.done [#allocation9], 192
    $region41: #{tpu_custom_call.1} parent=1 // pred_fallthru
      _
    %v85 = vld [vmem:[#allocation2] sm:$0xff]
    %v86 = vld [vmem:[#allocation5] sm:$0xff]
    %v87 = vld [vmem:[#allocation5 + $0x8] sm:$0xff]
    %v88 = vld [vmem:[#allocation5 + $0x10] sm:$0xff]
    %v89 = vld [vmem:[#allocation5 + $0x18] sm:$0xff]
    %v90 = vld [vmem:[#allocation5 + $0x20] sm:$0xff]
    %v91 = vld [vmem:[#allocation5 + $0x28] sm:$0xff]
    %v92 = vld [vmem:[#allocation5 + $0x30] sm:$0xff]
    %v93 = vld [vmem:[#allocation5 + $0x38] sm:$0xff]
    %v94 = vld [vmem:[#allocation5 + $0x40] sm:$0xff]
    %v95 = vld [vmem:[#allocation5 + $0x48] sm:$0xff]
    %v96 = vld [vmem:[#allocation5 + $0x50] sm:$0xff]
    %v97 = vld [vmem:[#allocation5 + $0x58] sm:$0xff]
    %v98 = vld [vmem:[#allocation5 + $0x60] sm:$0xff]
    %v99 = vld [vmem:[#allocation5 + $0x68] sm:$0xff]
    %v100 = vld [vmem:[#allocation5 + $0x70] sm:$0xff]
    %v101 = vld [vmem:[#allocation5 + $0x78] sm:$0xff]
    %v102 = vld [vmem:[#allocation10] sm:$0x7]
    %v103 = vlaneseq
    %v104 = vshrl.u32 %v103, 7
    %v105 = vsub.s32 0, %v104
    %v106 = vrot.slane %v102, %v105
    %107 = vmatprep.subr.mxu0 0.0
    %108 = vmatpush1.msra.mxu0 %v101
    %109 = vmatprep.subr.mxu0 0.0
    %110 = vmatpush1.msra.mxu0 %v100
    %111 = vmatprep.subr.mxu0 0.0
    %112 = vmatpush1.msra.mxu0 %v99
    %113 = vmatprep.subr.mxu0 0.0
    %114 = vmatpush1.msra.mxu0 %v98
    %115 = vmatprep.subr.mxu0 0.0
    %116 = vmatpush1.msra.mxu0 %v97
    %117 = vmatprep.subr.mxu0 0.0
    %118 = vmatpush1.msra.mxu0 %v96
    %119 = vmatprep.subr.mxu0 0.0
    %120 = vmatpush1.msra.mxu0 %v95
    %121 = vmatprep.subr.mxu0 0.0
    %122 = vmatpush1.msra.mxu0 %v94
    %123 = vmatprep.subr.mxu0 0.0
    %124 = vmatpush1.msra.mxu0 %v93
    %125 = vmatprep.subr.mxu0 0.0
    %126 = vmatpush1.msra.mxu0 %v92
    %127 = vmatprep.subr.mxu0 0.0
    %128 = vmatpush1.msra.mxu0 %v91
    %129 = vmatprep.subr.mxu0 0.0
    %130 = vmatpush1.msra.mxu0 %v90
    %131 = vmatprep.subr.mxu0 0.0
    %132 = vmatpush1.msra.mxu0 %v89
    %133 = vmatprep.subr.mxu0 0.0
    %134 = vmatpush1.msra.mxu0 %v88
    %135 = vmatprep.subr.mxu0 0.0
    %136 = vmatpush1.msra.mxu0 %v87
    %137 = vmatprep.subr.mxu0 0.0
    %138 = vmatpush1.msra.mxu0 %v86
    %139 = vmatprep.subr.mxu0 0.0
    %140 = vmatpush2.msra.mxu0 0.0
    %141 = vmatprep.subr.mxu0 0.0
    %142 = vmatpush2.msra.mxu0 0.0
    %143 = vmatprep.subr.mxu0 0.0
    %144 = vmatpush2.msra.mxu0 0.0
    %145 = vmatprep.subr.mxu0 0.0
    %146 = vmatpush2.msra.mxu0 0.0
    %147 = vmatprep.subr.mxu0 0.0
    %148 = vmatpush2.msra.mxu0 0.0
    %149 = vmatprep.subr.mxu0 0.0
    %150 = vmatpush2.msra.mxu0 0.0
    %151 = vmatprep.subr.mxu0 0.0
    %152 = vmatpush2.msra.mxu0 0.0
    %153 = vmatprep.subr.mxu0 0.0
    %154 = vmatpush2.msra.mxu0 0.0
    %155 = vmatprep.subr.mxu0 0.0
    %156 = vmatpush2.msra.mxu0 0.0
    %157 = vmatprep.subr.mxu0 0.0
    %158 = vmatpush2.msra.mxu0 0.0
    %159 = vmatprep.subr.mxu0 0.0
    %160 = vmatpush2.msra.mxu0 0.0
    %161 = vmatprep.subr.mxu0 0.0
    %162 = vmatpush2.msra.mxu0 0.0
    %163 = vmatprep.subr.mxu0 0.0
    %164 = vmatpush2.msra.mxu0 0.0
    %165 = vmatprep.subr.mxu0 0.0
    %166 = vmatpush2.msra.mxu0 0.0
    %167 = vmatprep.subr.mxu0 0.0
    %168 = vmatpush2.msra.mxu0 0.0
    %169 = vmatprep.subr.mxu0 0.0
    %170 = vmatpush2.msra.mxu0 0.0
    %171 = vmatprep.mubr.f32.mxu0 0.0
    %172 = vmatmul.mubr.f32.gmra.mxu0 %v85
    %v173 = vpop.f32.mrf.mxu0
    %v174 = vadd.f32 %v106, %v173
    %v175 = vpop.f32.mrf.mxu0
    %176 = vdwg.mxu0
    %v177 = vrot.slane %v174, 4
    %v178 = vadd.f32 %v174, %v177
    %v179 = vrot.slane %v178, 2
    %v180 = vadd.f32 %v178, %v179
    %v181 = vrot.slane %v180, 1
    %v182 = vadd.f32 %v180, %v181
    %v183 = vrcp.pop 8.0
    %v184 = vmul.f32 %v182, %v183
    %v185 = vmul.f32 %v174, %v174
    %v186 = vrot.slane %v185, 4
    %v187 = vadd.f32 %v185, %v186
    %v188 = vrot.slane %v187, 2
    %v189 = vadd.f32 %v187, %v188
    %v190 = vrot.slane %v189, 1
    %v191 = vadd.f32 %v189, %v190
    %v192 = vmul.f32 %v191, %v183
    %v193 = vmul.f32 %v184, %v184
    %v194 = vsub.f32 %v192, %v193
    %v195 = vmax.f32 %v194, 0.0
    %v196 = vadd.f32 %v195, 1e-05
    %v197 = vrsqrt.pop %v196
    %v198 = vmul.f32 %v102, %v197
    %v200 = vlaneseq
    %v201 = vshrl.u32 %v200, 7
    %v202 = vsub.s32 1, %v201
    %v203 = vrot.slane %v198, %v202
    %v205 = vmul.f32 %v184, %v203
    %v207 = vrot.slane %v205, 6
    %v209 = vsub.f32 %v102, %v207
    %v210 = vlaneseq
    %v211 = vshrl.u32 %v210, 7
    %v212 = vsub.s32 1, %v211
    %v213 = vrot.slane %v198, %v212
    %v214 = vmul.f32 %v174, %v213
    %v215 = vlaneseq
    %v216 = vshrl.u32 %v215, 7
    %v217 = vsub.s32 2, %v216
    %v218 = vrot.slane %v209, %v217
    %v219 = vadd.f32 %v214, %v218
    %v220 = vtanh.pop %v219
    %v221 = vld [vmem:[#allocation7] sm:$0xff]
    %v222 = vld [vmem:[#allocation7 + $0x8] sm:$0xff]
    %v223 = vld [vmem:[#allocation7 + $0x10] sm:$0xff]
    %v224 = vld [vmem:[#allocation7 + $0x18] sm:$0xff]
    %v225 = vld [vmem:[#allocation7 + $0x20] sm:$0xff]
    %v226 = vld [vmem:[#allocation7 + $0x28] sm:$0xff]
    %v227 = vld [vmem:[#allocation7 + $0x30] sm:$0xff]
    %v228 = vld [vmem:[#allocation7 + $0x38] sm:$0xff]
    %v229 = vld [vmem:[#allocation7 + $0x40] sm:$0xff]
    %v230 = vld [vmem:[#allocation7 + $0x48] sm:$0xff]
    %v231 = vld [vmem:[#allocation7 + $0x50] sm:$0xff]
    %v232 = vld [vmem:[#allocation7 + $0x58] sm:$0xff]
    %v233 = vld [vmem:[#allocation7 + $0x60] sm:$0xff]
    %v234 = vld [vmem:[#allocation7 + $0x68] sm:$0xff]
    %v235 = vld [vmem:[#allocation7 + $0x70] sm:$0xff]
    %v236 = vld [vmem:[#allocation7 + $0x78] sm:$0xff]
    %v237 = vld [vmem:[#allocation10 + $0x4] sm:$0x7]
    %v238 = vlaneseq
    %v239 = vshrl.u32 %v238, 7
    %v240 = vsub.s32 0, %v239
    %v241 = vrot.slane %v237, %v240
    %242 = vmatprep.subr.mxu0 0.0
    %243 = vmatpush1.msra.mxu0 %v236
    %244 = vmatprep.subr.mxu0 0.0
    %245 = vmatpush1.msra.mxu0 %v235
    %246 = vmatprep.subr.mxu0 0.0
    %247 = vmatpush1.msra.mxu0 %v234
    %248 = vmatprep.subr.mxu0 0.0
    %249 = vmatpush1.msra.mxu0 %v233
    %250 = vmatprep.subr.mxu0 0.0
    %251 = vmatpush1.msra.mxu0 %v232
    %252 = vmatprep.subr.mxu0 0.0
    %253 = vmatpush1.msra.mxu0 %v231
    %254 = vmatprep.subr.mxu0 0.0
    %255 = vmatpush1.msra.mxu0 %v230
    %256 = vmatprep.subr.mxu0 0.0
    %257 = vmatpush1.msra.mxu0 %v229
    %258 = vmatprep.subr.mxu0 0.0
    %259 = vmatpush1.msra.mxu0 %v228
    %260 = vmatprep.subr.mxu0 0.0
    %261 = vmatpush1.msra.mxu0 %v227
    %262 = vmatprep.subr.mxu0 0.0
    %263 = vmatpush1.msra.mxu0 %v226
    %264 = vmatprep.subr.mxu0 0.0
    %265 = vmatpush1.msra.mxu0 %v225
    %266 = vmatprep.subr.mxu0 0.0
    %267 = vmatpush1.msra.mxu0 %v224
    %268 = vmatprep.subr.mxu0 0.0
    %269 = vmatpush1.msra.mxu0 %v223
    %270 = vmatprep.subr.mxu0 0.0
    %271 = vmatpush1.msra.mxu0 %v222
    %272 = vmatprep.subr.mxu0 0.0
    %273 = vmatpush1.msra.mxu0 %v221
    %274 = vmatprep.subr.mxu0 0.0
    %275 = vmatpush2.msra.mxu0 0.0
    %276 = vmatprep.subr.mxu0 0.0
    %277 = vmatpush2.msra.mxu0 0.0
    %278 = vmatprep.subr.mxu0 0.0
    %279 = vmatpush2.msra.mxu0 0.0
    %280 = vmatprep.subr.mxu0 0.0
    %281 = vmatpush2.msra.mxu0 0.0
    %282 = vmatprep.subr.mxu0 0.0
    %283 = vmatpush2.msra.mxu0 0.0
    %284 = vmatprep.subr.mxu0 0.0
    %285 = vmatpush2.msra.mxu0 0.0
    %286 = vmatprep.subr.mxu0 0.0
    %287 = vmatpush2.msra.mxu0 0.0
    %288 = vmatprep.subr.mxu0 0.0
    %289 = vmatpush2.msra.mxu0 0.0
    %290 = vmatprep.subr.mxu0 0.0
    %291 = vmatpush2.msra.mxu0 0.0
    %292 = vmatprep.subr.mxu0 0.0
    %293 = vmatpush2.msra.mxu0 0.0
    %294 = vmatprep.subr.mxu0 0.0
    %295 = vmatpush2.msra.mxu0 0.0
    %296 = vmatprep.subr.mxu0 0.0
    %297 = vmatpush2.msra.mxu0 0.0
    %298 = vmatprep.subr.mxu0 0.0
    %299 = vmatpush2.msra.mxu0 0.0
    %300 = vmatprep.subr.mxu0 0.0
    %301 = vmatpush2.msra.mxu0 0.0
    %302 = vmatprep.subr.mxu0 0.0
    %303 = vmatpush2.msra.mxu0 0.0
    %304 = vmatprep.subr.mxu0 0.0
    %305 = vmatpush2.msra.mxu0 0.0
    %306 = vmatprep.mubr.f32.mxu0 0.0
    %307 = vmatmul.mubr.f32.gmra.mxu0 %v220
    %v308 = vpop.f32.mrf.mxu0
    %v309 = vadd.f32 %v241, %v308
    %v310 = vpop.f32.mrf.mxu0
    %311 = vdwg.mxu0
    %v312 = vrot.slane %v309, 4
    %v313 = vadd.f32 %v309, %v312
    %v314 = vrot.slane %v313, 2
    %v315 = vadd.f32 %v313, %v314
    %v316 = vrot.slane %v315, 1
    %v317 = vadd.f32 %v315, %v316
    %v318 = vmul.f32 %v317, %v183
    %v319 = vmul.f32 %v309, %v309
    %v320 = vrot.slane %v319, 4
    %v321 = vadd.f32 %v319, %v320
    %v322 = vrot.slane %v321, 2
    %v323 = vadd.f32 %v321, %v322
    %v324 = vrot.slane %v323, 1
    %v325 = vadd.f32 %v323, %v324
    %v326 = vmul.f32 %v325, %v183
    %v327 = vmul.f32 %v318, %v318
    %v328 = vsub.f32 %v326, %v327
    %v329 = vmax.f32 %v328, 0.0
    %v330 = vadd.f32 %v329, 1e-05
    %v331 = vrsqrt.pop %v330
    %v332 = vmul.f32 %v237, %v331
    %v334 = vlaneseq
    %v335 = vshrl.u32 %v334, 7
    %v336 = vsub.s32 1, %v335
    %v337 = vrot.slane %v332, %v336
    %v339 = vmul.f32 %v318, %v337
    %v341 = vrot.slane %v339, 6
    %v343 = vsub.f32 %v237, %v341
    %v344 = vlaneseq
    %v345 = vshrl.u32 %v344, 7
    %v346 = vsub.s32 1, %v345
    %v347 = vrot.slane %v332, %v346
    %v348 = vmul.f32 %v309, %v347
    %v349 = vlaneseq
    %v350 = vshrl.u32 %v349, 7
    %v351 = vsub.s32 2, %v350
    %v352 = vrot.slane %v343, %v351
    %v353 = vadd.f32 %v348, %v352
    %v354 = vtanh.pop %v353
    %v355 = vld [vmem:[#allocation8] sm:$0xff]
    %v356 = vld [vmem:[#allocation8 + $0x8] sm:$0xff]
    %v357 = vld [vmem:[#allocation8 + $0x10] sm:$0xff]
    %v358 = vld [vmem:[#allocation8 + $0x18] sm:$0xff]
    %v359 = vld [vmem:[#allocation8 + $0x20] sm:$0xff]
    %v360 = vld [vmem:[#allocation8 + $0x28] sm:$0xff]
    %v361 = vld [vmem:[#allocation8 + $0x30] sm:$0xff]
    %v362 = vld [vmem:[#allocation8 + $0x38] sm:$0xff]
    %v363 = vld [vmem:[#allocation8 + $0x40] sm:$0xff]
    %v364 = vld [vmem:[#allocation8 + $0x48] sm:$0xff]
    %v365 = vld [vmem:[#allocation8 + $0x50] sm:$0xff]
    %v366 = vld [vmem:[#allocation8 + $0x58] sm:$0xff]
    %v367 = vld [vmem:[#allocation8 + $0x60] sm:$0xff]
    %v368 = vld [vmem:[#allocation8 + $0x68] sm:$0xff]
    %v369 = vld [vmem:[#allocation8 + $0x70] sm:$0xff]
    %v370 = vld [vmem:[#allocation8 + $0x78] sm:$0xff]
    %v371 = vld [vmem:[#allocation10 + $0x8] sm:$0x1]
    %v372 = vlaneseq
    %v373 = vshrl.u32 %v372, 7
    %v374 = vsub.s32 0, %v373
    %v375 = vrot.slane %v371, %v374
    %376 = vmatprep.subr.mxu0 0.0
    %377 = vmatpush1.msra.mxu0 %v370
    %378 = vmatprep.subr.mxu0 0.0
    %379 = vmatpush1.msra.mxu0 %v369
    %380 = vmatprep.subr.mxu0 0.0
    %381 = vmatpush1.msra.mxu0 %v368
    %382 = vmatprep.subr.mxu0 0.0
    %383 = vmatpush1.msra.mxu0 %v367
    %384 = vmatprep.subr.mxu0 0.0
    %385 = vmatpush1.msra.mxu0 %v366
    %386 = vmatprep.subr.mxu0 0.0
    %387 = vmatpush1.msra.mxu0 %v365
    %388 = vmatprep.subr.mxu0 0.0
    %389 = vmatpush1.msra.mxu0 %v364
    %390 = vmatprep.subr.mxu0 0.0
    %391 = vmatpush1.msra.mxu0 %v363
    %392 = vmatprep.subr.mxu0 0.0
    %393 = vmatpush1.msra.mxu0 %v362
    %394 = vmatprep.subr.mxu0 0.0
    %395 = vmatpush1.msra.mxu0 %v361
    %396 = vmatprep.subr.mxu0 0.0
    %397 = vmatpush1.msra.mxu0 %v360
    %398 = vmatprep.subr.mxu0 0.0
    %399 = vmatpush1.msra.mxu0 %v359
    %400 = vmatprep.subr.mxu0 0.0
    %401 = vmatpush1.msra.mxu0 %v358
    %402 = vmatprep.subr.mxu0 0.0
    %403 = vmatpush1.msra.mxu0 %v357
    %404 = vmatprep.subr.mxu0 0.0
    %405 = vmatpush1.msra.mxu0 %v356
    %406 = vmatprep.subr.mxu0 0.0
    %407 = vmatpush1.msra.mxu0 %v355
    %408 = vmatprep.subr.mxu0 0.0
    %409 = vmatpush2.msra.mxu0 0.0
    %410 = vmatprep.subr.mxu0 0.0
    %411 = vmatpush2.msra.mxu0 0.0
    %412 = vmatprep.subr.mxu0 0.0
    %413 = vmatpush2.msra.mxu0 0.0
    %414 = vmatprep.subr.mxu0 0.0
    %415 = vmatpush2.msra.mxu0 0.0
    %416 = vmatprep.subr.mxu0 0.0
    %417 = vmatpush2.msra.mxu0 0.0
    %418 = vmatprep.subr.mxu0 0.0
    %419 = vmatpush2.msra.mxu0 0.0
    %420 = vmatprep.subr.mxu0 0.0
    %421 = vmatpush2.msra.mxu0 0.0
    %422 = vmatprep.subr.mxu0 0.0
    %423 = vmatpush2.msra.mxu0 0.0
    %424 = vmatprep.subr.mxu0 0.0
    %425 = vmatpush2.msra.mxu0 0.0
    %426 = vmatprep.subr.mxu0 0.0
    %427 = vmatpush2.msra.mxu0 0.0
    %428 = vmatprep.subr.mxu0 0.0
    %429 = vmatpush2.msra.mxu0 0.0
    %430 = vmatprep.subr.mxu0 0.0
    %431 = vmatpush2.msra.mxu0 0.0
    %432 = vmatprep.subr.mxu0 0.0
    %433 = vmatpush2.msra.mxu0 0.0
    %434 = vmatprep.subr.mxu0 0.0
    %435 = vmatpush2.msra.mxu0 0.0
    %436 = vmatprep.subr.mxu0 0.0
    %437 = vmatpush2.msra.mxu0 0.0
    %438 = vmatprep.subr.mxu0 0.0
    %439 = vmatpush2.msra.mxu0 0.0
    %440 = vmatprep.mubr.f32.mxu0 0.0
    %441 = vmatmul.mubr.f32.gmra.mxu0 %v354
    %v442 = vpop.f32.mrf.mxu0
    %v443 = vadd.f32 %v375, %v442
    %v444 = vpop.f32.mrf.mxu0
    %445 = vdwg.mxu0
    %446 = vst [vmem:[#allocation11] sm:$0xff] %v443
    // Predicated region
    $region42: #{tpu_custom_call.1} parent=1 // pred_check
      _
    $region43: #{tpu_custom_call.1} parent=1 // pred_check_branch
      %448 = sbr.rel (0) target = $region45
    $region44: #{tpu_custom_call.1} parent=1 // pred_region
      %s450 = ssub.s32 128, 128
      %451 = vsyncadd [#allocation4], %s450
      %s453 = sshll.u32 [#allocation11], 4
      %s454 = int_to_ptr.vmem [resolvable:$true] %s453
      %456 = dma.vmem_to_hbm [thread:$0]  %s454, 128, %s5, [#allocation4]
    $region45: #{tpu_custom_call.1} parent=1 // pred_fallthru
      _
    // Predicated region
    $region46: #{tpu_custom_call.1} parent=1 // pred_check
      _
    $region47: #{tpu_custom_call.1} parent=1 // pred_check_branch
      %458 = sbr.rel (0) target = $region49
    $region48: #{tpu_custom_call.1} parent=1 // pred_region
      %459 = dma.done [#allocation4], 128
    $region49: #{tpu_custom_call.1} parent=1 // pred_fallthru
      _
    %460 = vsyncpa [#allocation3], 1
    %461 = vsyncpa [#allocation6], 1
    %462 = vsyncpa [#allocation9], 1
    %463 = vsyncpa [#allocation4], 1

</llo_original>
